<compile_context>
chip_gen: v7x
topology: tpu7x:2x2x1
jax: 0.10.0
libtpu: 0.0.40
codegen_flags: <defaults>
</compile_context>

<pallas_src>
import functools

import jax
import jax.numpy as jnp
from jax.experimental import pallas as pl
from jax.experimental.pallas import tpu as pltpu


def _decaying_mse_kernel(y_ref, yhat_ref, w_ref, out_ref, *,
                         block_rows, total_rows, need_mask):
    """Grid = (cdiv(B, Bb),).  Each step reduces one (Bb, T*D) slab to a scalar."""
    b = pl.program_id(0)

    diff = y_ref[...].astype(jnp.float32) - yhat_ref[...].astype(jnp.float32)

    if need_mask:
        # Zero rows past the real batch (edge-block padding).  Use a select
        # (jnp.where), never multiply-by-0, so padded garbage can't leak NaNs.
        row = (jax.lax.broadcasted_iota(jnp.int32, (block_rows, 1), 0)
               + b * block_rows)
        diff = jnp.where(row < total_rows, diff, 0.0)

    # w_ref is (1, T*D): decay weights, zeroed over the washout region.
    # Broadcast over the Bb sublane rows -> pure VPU; one cross-lane reduce
    # per multi-MiB block is negligible while HBM-bound.
    s = jnp.sum(diff * diff * w_ref[...])
    out_ref[...] = jnp.full(out_ref.shape, s, dtype=jnp.float32)


def _vmem_capacity_bytes() -> int:
    try:
        return int(pltpu.get_tpu_info().vmem_capacity_bytes)
    except Exception:
        return 64 * 1024 * 1024   # conservative fallback (v7x-sized VMEM)


def decaying_mse_loss(y, y_hat, washout: int = 0, gamma: float = 1.0):
    """JAX/Pallas equivalent of DecayingMSELoss.forward.

    y, y_hat: (B, T, D) arrays.  Returns a float32 scalar.
    """
    assert y.shape == y_hat.shape and y.ndim == 3
    B, T, D = y.shape
    T_eff = T - washout
    assert T_eff > 0

    L = T * D
    denom = float(B * T_eff * D)

    # NOTE: the torch module's "plain MSE" fast path condition
    #   1.0 - 1e-08 <= gamma <= 1.0 - 1e-06
    # is an empty range (dead code), so forward() always takes the decay path.
    # gamma == 1.0 gives all-ones weights, identical to plain MSE.
    t = jnp.arange(T, dtype=jnp.float32)
    decay_t = jnp.where(t >= washout,
                        jnp.power(jnp.float32(gamma), t - washout),
                        0.0)
    # Lane-dense (1, T*D) weights, resident in VMEM across the whole grid.
    w = jnp.repeat(decay_t, D).reshape(1, L)

    # Lane-dense flatten: contiguous collapse of (T, D) -> T*D; no HBM copy,
    # and no washout slice copy either (washout handled via zero weights).
    y2 = y.reshape(B, L)
    yh2 = y_hat.reshape(B, L)

    # ---- Block sizing (dtype- and generation-aware) ----
    in_item = jnp.dtype(y.dtype).itemsize
    row_in_bytes = L * in_item

    vmem_cap = _vmem_capacity_bytes()
    # Explicit scoped-VMEM limit: ~3/4 of physical, capped.
    #   v5e/v6e (128 MiB) -> 96 MiB ; v7x (64 MiB) -> 48 MiB.
    vmem_limit = int(min(vmem_cap * 3 // 4, 96 * 1024 * 1024))

    # Per batch row: 2 inputs x 2 pipeline buffers (input dtype) plus ~2 f32
    # elementwise temporaries inside the kernel body.
    bytes_per_row = 2 * 2 * row_in_bytes + 2 * L * 4
    budget = int(vmem_limit * 0.6)

    bb_budget = max(1, budget // max(bytes_per_row, 1))
    bb_target = max(1, (8 * 1024 * 1024) // max(row_in_bytes, 1))  # ~8 MiB/input block
    bb_raw = min(bb_budget, bb_target)

    # Sub-32-bit dtypes pack along sublanes: align Bb to the packed sublane
    # count (8 rows f32, 16 bf16, 32 int8/fp8).
    packing = max(1, 4 // in_item)
    align = 8 * packing

    if bb_raw >= B:
        Bb = B                                   # one block covers the batch
    else:
        Bb = max(align, (bb_raw // align) * align)
    nb = pl.cdiv(B, Bb)
    need_mask = (B % Bb) != 0

    kernel = functools.partial(_decaying_mse_kernel,
                               block_rows=Bb, total_rows=B,
                               need_mask=need_mask)

    # Per-block partial sums: each grid step owns one (1, 8, 128) output tile
    # (clean (8,128)-aligned store), summed + divided once in JAX below.
    out = pl.pallas_call(
        kernel,
        out_shape=jax.ShapeDtypeStruct((nb, 8, 128), jnp.float32),
        grid_spec=pltpu.PrefetchScalarGridSpec(
            num_scalar_prefetch=0,
            grid=(nb,),
            in_specs=[
                pl.BlockSpec((Bb, L), lambda i: (i, 0)),
                pl.BlockSpec((Bb, L), lambda i: (i, 0)),
                pl.BlockSpec((1, L), lambda i: (0, 0)),   # resident weights
            ],
            out_specs=pl.BlockSpec((1, 8, 128), lambda i: (i, 0, 0)),
        ),
        compiler_params=pltpu.CompilerParams(
            # Independent per-block outputs -> parallel (megacore on v7x).
            dimension_semantics=("parallel",),
            vmem_limit_bytes=vmem_limit),
    )(y2, yh2, w)

    # Final tiny reduction + single scalar divide in JAX (numerically nicer
    # than folding 1/denom into every accumulated term).
    partials = out[:, 0, 0]
    return jnp.sum(partials) / jnp.float32(denom)


def _reference(y, y_hat, washout, gamma):
    T_eff = y.shape[1] - washout
    decay = jnp.power(jnp.float32(gamma),
                      jnp.arange(T_eff, dtype=jnp.float32))[None, :, None]
    se = (y[:, washout:, :] - y_hat[:, washout:, :]) ** 2
    return jnp.mean(decay * se)


if __name__ == "__main__":
    key = jax.random.PRNGKey(0)
    k1, k2 = jax.random.split(key)

    B, T, D = 2, 8, 32
    washout, gamma = 2, 0.9

    y = jax.random.normal(k1, (B, T, D), dtype=jnp.float32)
    y_hat = jax.random.normal(k2, (B, T, D), dtype=jnp.float32)

    loss = jax.block_until_ready(
        decaying_mse_loss(y, y_hat, washout=washout, gamma=gamma))
    ref = _reference(y, y_hat, washout, gamma)
    assert jnp.allclose(loss, ref, rtol=1e-5, atol=1e-6), (loss, ref)

    # Default-parameter path (washout=0, gamma=1.0 -> plain MSE).
    loss2 = jax.block_until_ready(decaying_mse_loss(y, y_hat))
    ref2 = _reference(y, y_hat, 0, 1.0)
    assert jnp.allclose(loss2, ref2, rtol=1e-5, atol=1e-6), (loss2, ref2)

    print("KERNEL_OK")
</pallas_src>

<mosaic_0001>
module attributes {stable_mosaic.version = 11 : i64} {
  func.func @_decaying_mse_kernel(%arg0: i32, %arg1: memref<2x256xf32, #tpu.memory_space<vmem>>, %arg2: memref<2x256xf32, #tpu.memory_space<vmem>>, %arg3: memref<1x256xf32, #tpu.memory_space<vmem>>, %arg4: memref<1x8x128xf32, #tpu.memory_space<vmem>>) attributes {dimension_semantics = [#tpu.dimension_semantics<parallel>], iteration_bounds = array<i64: 1>, scalar_prefetch = 0 : i64, scratch_operands = 0 : i64, tpu.core_type = #tpu.core_type<tc>, window_params = [{transform_indices = @transform_0, window_bounds = array<i64: 2, 256>}, {transform_indices = @transform_1, window_bounds = array<i64: 2, 256>}, {pipeline_mode = #tpu.pipeline_mode<synchronous>, transform_indices = @transform_2, window_bounds = array<i64: 1, 256>}, {transform_indices = @transform_3, window_bounds = array<i64: 1, 8, 128>}]} {
    %c0 = arith.constant 0 : index
    %c0_0 = arith.constant 0 : index
    %0 = vector.load %arg1[%c0, %c0_0] : memref<2x256xf32, #tpu.memory_space<vmem>>, vector<2x256xf32>
    %c0_1 = arith.constant 0 : index
    %c0_2 = arith.constant 0 : index
    %1 = vector.load %arg2[%c0_1, %c0_2] : memref<2x256xf32, #tpu.memory_space<vmem>>, vector<2x256xf32>
    %2 = arith.subf %0, %1 : vector<2x256xf32>
    %3 = arith.mulf %2, %2 : vector<2x256xf32>
    %c0_3 = arith.constant 0 : index
    %c0_4 = arith.constant 0 : index
    %4 = vector.load %arg3[%c0_3, %c0_4] : memref<1x256xf32, #tpu.memory_space<vmem>>, vector<1x256xf32>
    %5 = vector.broadcast %4 : vector<1x256xf32> to vector<2x256xf32>
    %6 = arith.mulf %3, %5 : vector<2x256xf32>
    %7 = vector.shape_cast %6 : vector<2x256xf32> to vector<1x2x256xf32>
    %cst = arith.constant dense<0.000000e+00> : vector<1xf32>
    %8 = vector.multi_reduction <add>, %7, %cst [1, 2] : vector<1x2x256xf32> to vector<1xf32>
    %9 = vector.shape_cast %8 : vector<1xf32> to vector<1x1x1xf32>
    %10 = vector.extract %9[0, 0, 0] : f32 from vector<1x1x1xf32>
    %11 = vector.broadcast %10 : f32 to vector<1x8x128xf32>
    %c0_5 = arith.constant 0 : index
    %c0_6 = arith.constant 0 : index
    %c0_7 = arith.constant 0 : index
    %12 = vector.load %arg4[%c0_5, %c0_6, %c0_7] : memref<1x8x128xf32, #tpu.memory_space<vmem>>, vector<1x8x128xf32>
    tpu.vector_store %arg4[%c0_5, %c0_6, %c0_7], %11 {strides = array<i32>} : memref<1x8x128xf32, #tpu.memory_space<vmem>>, vector<1x8x128xf32>,
    return
  }
  func.func @transform_0(%arg0: i32) -> (i32, i32) {
    %c0_i32 = arith.constant 0 : i32
    %c0_i32_0 = arith.constant 0 : i32
    return %arg0, %c0_i32 : i32, i32
  }
  func.func @transform_1(%arg0: i32) -> (i32, i32) {
    %c0_i32 = arith.constant 0 : i32
    %c0_i32_0 = arith.constant 0 : i32
    return %arg0, %c0_i32 : i32, i32
  }
  func.func @transform_2(%arg0: i32) -> (i32, i32) {
    %c0_i32 = arith.constant 0 : i32
    %c0_i32_0 = arith.constant 0 : i32
    %c0_i32_1 = arith.constant 0 : i32
    return %c0_i32, %c0_i32_0 : i32, i32
  }
  func.func @transform_3(%arg0: i32) -> (i32, i32, i32) {
    %c0_i32 = arith.constant 0 : i32
    %c0_i32_0 = arith.constant 0 : i32
    %c0_i32_1 = arith.constant 0 : i32
    return %arg0, %c0_i32, %c0_i32_0 : i32, i32, i32
  }
}

</mosaic_0001>

<llo_original>
// kernel: tpu_custom_call.1
$region0: #{tpu_custom_call.1}
  #allocation0 [shape = 'u32[]', space=smem, size = 0x4, offset = 0x4, fixed_abs, tag = 'smem constant byte address 0x4 - core index']
  #allocation1 [shape = 'u32[144,128]{1,0:T(1,128)}', space=vmem, size = 0x12000, scoped, tag = 'internal scratch']
  %s0 = inlined_call_operand.hbm [shape: f32[2,256], index: 0, kind: input, shape index: {}]
  %s1 = inlined_call_operand.hbm [shape: f32[2,256], index: 1, kind: input, shape index: {}]
  %s2 = inlined_call_operand.vmem [shape: f32[1,256], index: 2, kind: input, shape index: {}]
  %s3 = inlined_call_operand.hbm [shape: f32[1,8,128], index: 3, kind: output, shape index: {}]
  %s4 = sld [smem:[#allocation0]]
  $region30: #{tpu_custom_call.1} parent=0
    _
  %s6 = ssub.s32 1, %s4
  %s7 = scalar_select 0, %s6, %s4
  $region1: #{tpu_custom_call.1} parent=0
    #allocation2 [shape = 'u8[2048]{0}', space=vmem, size = 0x800, scoped, tag = 'input window, operand 0, single buffered']
    #allocation3 [shape = 's32[1]{0}', space=sflag, size = 0x4, scoped, tag = 'scoped memory for tpu_custom_call.1']
    #allocation4 [shape = 's32[1]{0}', space=sflag, size = 0x4, scoped, tag = 'scoped memory for tpu_custom_call.1']
    #allocation5 [shape = 'u8[2048]{0}', space=vmem, size = 0x800, scoped, tag = 'input window, operand 1, single buffered']
    #allocation6 [shape = 's32[1]{0}', space=sflag, size = 0x4, scoped, tag = 'scoped memory for tpu_custom_call.1']
    #allocation7 [shape = 'u8[4096]{0}', space=vmem, size = 0x1000, scoped, tag = 'output window, operand 0, single buffered']
    %8 = vsyncpa [#allocation3], 0
    %9 = vsyncpa [#allocation6], 0
    %10 = vsyncpa [#allocation4], 0
    // Predicated region
    $region2: #{tpu_custom_call.1} parent=1 // pred_check
      _
    $region3: #{tpu_custom_call.1} parent=1 // pred_check_branch
      %12 = sbr.rel (0) target = $region5
    $region4: #{tpu_custom_call.1} parent=1 // pred_region
      %s14 = ssub.s32 64, 64
      %15 = vsyncadd [#allocation3], %s14
      %s17 = sshll.u32 [#allocation2], 4
      %s18 = int_to_ptr.vmem [resolvable:$true] %s17
      %20 = dma.hbm_to_vmem [thread:$0]  %s0, 64, %s18, [#allocation3]
    $region5: #{tpu_custom_call.1} parent=1 // pred_fallthru
      _
    // Predicated region
    $region6: #{tpu_custom_call.1} parent=1 // pred_check
      _
    $region7: #{tpu_custom_call.1} parent=1 // pred_check_branch
      %22 = sbr.rel (0) target = $region9
    $region8: #{tpu_custom_call.1} parent=1 // pred_region
      %s24 = ssub.s32 64, 64
      %25 = vsyncadd [#allocation6], %s24
      %s27 = sshll.u32 [#allocation5], 4
      %s28 = int_to_ptr.vmem [resolvable:$true] %s27
      %30 = dma.hbm_to_vmem [thread:$0]  %s1, 64, %s28, [#allocation6]
    $region9: #{tpu_custom_call.1} parent=1 // pred_fallthru
      _
    // Predicated region
    $region10: #{tpu_custom_call.1} parent=1 // pred_check
      _
    $region11: #{tpu_custom_call.1} parent=1 // pred_check_branch
      %32 = sbr.rel (0) target = $region13
    $region12: #{tpu_custom_call.1} parent=1 // pred_region
      _
    $region13: #{tpu_custom_call.1} parent=1 // pred_fallthru
      _
    // Predicated region
    $region14: #{tpu_custom_call.1} parent=1 // pred_check
      _
    $region15: #{tpu_custom_call.1} parent=1 // pred_check_branch
      %34 = sbr.rel (0) target = $region17
    $region16: #{tpu_custom_call.1} parent=1 // pred_region
      %35 = dma.done [#allocation3], 64
    $region17: #{tpu_custom_call.1} parent=1 // pred_fallthru
      _
    // Predicated region
    $region18: #{tpu_custom_call.1} parent=1 // pred_check
      _
    $region19: #{tpu_custom_call.1} parent=1 // pred_check_branch
      %37 = sbr.rel (0) target = $region21
    $region20: #{tpu_custom_call.1} parent=1 // pred_region
      %38 = dma.done [#allocation6], 64
    $region21: #{tpu_custom_call.1} parent=1 // pred_fallthru
      _
    %v39 = vld [vmem:[#allocation2] sm:$0xf]
    %v40 = vld [vmem:[#allocation5] sm:$0xf]
    %v41 = vsub.f32 %v39, %v40
    %v42 = vmul.f32 %v41, %v41
    %v43 = vld [vmem:[%s2] sm:$0x3]
    %v45 = vlaneseq
    %v46 = vshrl.u32 %v45, 7
    %v47 = vsub.s32 0, %v46
    %v48 = vrot.slane %v43, %v47
    %v49 = vlaneseq
    %v50 = vshrl.u32 %v49, 7
    %v51 = vsub.s32 1, %v50
    %v52 = vrot.slane %v43, %v51
    %v53 = vcombine.low %v48, %v52
    %v55 = vunpack.c.l.s4 1983009808
    %v56 = vunpack.c.0.s8 %v55
    %v57 = vlaneseq
    %v58 = vshrl.u32 %v57, 7
    %v59 = vsub.s32 %v56, %v58
    %v60 = vrot.slane %v53, %v59
    %v62 = vmul.f32 %v42, %v60
    %v65 = vunpack.c.l.s4 1983009808
    %v66 = vunpack.c.0.s8 %v65
    %v67 = vlaneseq
    %v68 = vshrl.u32 %v67, 7
    %v69 = vsub.s32 %v66, %v68
    %v70 = vrot.slane %v62, %v69
    %v71 = vcombine.high %v70, %v70
    %vm74 = vcmask 1041408
    %v75 = vsel %vm74, %v70, 0.0
    %v76 = vsel %vm74, %v71, 0.0
    %v77 = vadd.f32 %v75, %v76
    %78 = vadd.xlane.f32.xlu0 %v77
    %v79 = vpop.xlane.xlu0 %78
    %v80 = vrot.slane %v79, 4
    %v81 = vadd.f32 %v79, %v80
    %v82 = vrot.slane %v81, 2
    %v83 = vadd.f32 %v81, %v82
    %v84 = vrot.slane %v83, 1
    %v85 = vadd.f32 %v83, %v84
    %s86 = vtos %v85
    %v87 = vstv %s86
    %88 = vst [vmem:[#allocation7] sm:$0xff] %v87
    // Predicated region
    $region22: #{tpu_custom_call.1} parent=1 // pred_check
      _
    $region23: #{tpu_custom_call.1} parent=1 // pred_check_branch
      %90 = sbr.rel (0) target = $region25
    $region24: #{tpu_custom_call.1} parent=1 // pred_region
      %s92 = ssub.s32 128, 128
      %93 = vsyncadd [#allocation4], %s92
      %s95 = sshll.u32 [#allocation7], 4
      %s96 = int_to_ptr.vmem [resolvable:$true] %s95
      %98 = dma.vmem_to_hbm [thread:$0]  %s96, 128, %s3, [#allocation4]
    $region25: #{tpu_custom_call.1} parent=1 // pred_fallthru
      _
    // Predicated region
    $region26: #{tpu_custom_call.1} parent=1 // pred_check
      _
    $region27: #{tpu_custom_call.1} parent=1 // pred_check_branch
      %100 = sbr.rel (0) target = $region29
    $region28: #{tpu_custom_call.1} parent=1 // pred_region
      %101 = dma.done [#allocation4], 128
    $region29: #{tpu_custom_call.1} parent=1 // pred_fallthru
      _
    %102 = vsyncpa [#allocation3], 1
    %103 = vsyncpa [#allocation6], 1
    %104 = vsyncpa [#allocation4], 1

</llo_original>
